<compile_context>
chip_gen: v6e
topology: v6e:2x2x1
jax: 0.10.0
libtpu: 0.0.40
codegen_flags: <defaults>
</compile_context>

<pallas_src>
import functools
import math

import jax
import jax.numpy as jnp
from jax import lax
from jax.experimental import pallas as pl
from jax.experimental.pallas import tpu as pltpu


def _normalize_rows(v):
    # F.normalize: v / max(||v||_2, 1e-12)  ==  v * rsqrt(max(||v||^2, 1e-24))
    sq = jnp.sum(v * v, axis=-1, keepdims=True)
    return v * lax.rsqrt(jnp.maximum(sq, 1e-24))


def _margin_kernel(x_ref, w_ref, lbl_ref, cos_ref, loss_ref, wn_ref, *,
                   s, m, block_c, use_bf16):
    j = pl.program_id(0)   # class tile (outer, "parallel")
    i = pl.program_id(1)   # batch tile (inner, "arbitrary")

    # Hoist W normalization: the W tile is resident across the whole inner batch loop,
    # so normalize it once per class tile (optionally down-cast to bf16 for the MXU).
    @pl.when(i == 0)
    def _():
        wn_ref[...] = _normalize_rows(w_ref[...].astype(jnp.float32)).astype(wn_ref.dtype)

    xn = _normalize_rows(x_ref[...].astype(jnp.float32))
    if use_bf16:
        xn = xn.astype(jnp.bfloat16)

    # MXU matmul in native (C, D) weight layout: contract last dim of both operands.
    cosine = lax.dot_general(
        xn, wn_ref[...],
        dimension_numbers=(((1,), (1,)), ((), ())),
        preferred_element_type=jnp.float32)                    # (bm, bc) f32
    cos_ref[...] = cosine

    # one_hot margin: shift the (bm,1) labels into this class tile's local coordinates,
    # then subtract s*m where the column matches (no per-element int offset / convert).
    lbl_local = lbl_ref[...] - j * block_c                     # (bm, 1) int32
    col = lax.broadcasted_iota(jnp.int32, cosine.shape, 1)     # (bm, bc)
    loss_ref[...] = s * cosine - jnp.where(col == lbl_local, jnp.float32(s * m), 0.0)


def _cosine_kernel(x_ref, w_ref, cos_ref, wn_ref, *, use_bf16):
    i = pl.program_id(1)

    @pl.when(i == 0)
    def _():
        wn_ref[...] = _normalize_rows(w_ref[...].astype(jnp.float32)).astype(wn_ref.dtype)

    xn = _normalize_rows(x_ref[...].astype(jnp.float32))
    if use_bf16:
        xn = xn.astype(jnp.bfloat16)
    cos_ref[...] = lax.dot_general(
        xn, wn_ref[...],
        dimension_numbers=(((1,), (1,)), ((), ())),
        preferred_element_type=jnp.float32)


# ----------------------------- tile / VMEM sizing ------------------------------------

def _vmem_capacity_bytes():
    try:
        return int(pltpu.get_tpu_info().vmem_capacity_bytes)
    except Exception:
        return 64 << 20        # conservative fallback == v7x per-TensorCore VMEM


def _estimate_vmem(bm, bc, D, n_out, wn_itemsize):
    x_buf = 2 * bm * D * 4                      # double-buffered x tile (f32)
    w_buf = 2 * bc * D * 4                      # double-buffered W tile (f32 input)
    wn_scr = bc * D * wn_itemsize               # hoisted normalized-W scratch
    out_buf = n_out * 2 * bm * bc * 4           # double-buffered f32 output tile(s)
    temps = 4 * bm * bc * 4 + 2 * bm * D * 4    # cosine / mask temporaries, xn
    return x_buf + w_buf + wn_scr + out_buf + temps


def _pick_bm(B, cap=256):
    if B <= cap:
        return B               # full batch dim (legal even if not 8-aligned)
    return (cap // 8) * 8


def _pick_bc(C, bm, D, n_out, wn_itemsize, budget):
    # Single lane-dense class tile when the whole class dim fits the VMEM budget.
    if C <= 2048 and _estimate_vmem(bm, C, D, n_out, wn_itemsize) <= budget:
        return C
    # Otherwise: largest 256-aligned (MXU-tile) class block that fits, floor 128.
    bc = min(2048, max(256, (C // 256) * 256))
    while bc > 256 and _estimate_vmem(bm, bc, D, n_out, wn_itemsize) > budget:
        bc -= 256
    if _estimate_vmem(bm, bc, D, n_out, wn_itemsize) > budget:
        bc = 128
    if bc >= C:
        bc = C                 # full class dim is always a legal block
    return bc


# ------------------------------------ wrapper -----------------------------------------

def add_margin_product(x, weight, label=None, *, s=15.0, m=0.4,
                       block_m=None, block_c=None, use_bf16=None):
    """Pallas implementation of AddMarginProduct.forward.

    Returns cosine if label is None, else (cosine, loss).
    """
    B, D = x.shape
    C, D2 = weight.shape
    assert D == D2, "in_features mismatch between x and weight"

    # bf16 MXU operands (f32 accumulation) only where the kernel is MXU-bound; at small
    # D it is HBM-store bound and the f32 path keeps the tight reference tolerance.
    if use_bf16 is None:
        use_bf16 = D >= 256
    n_out = 1 if label is None else 2
    wn_itemsize = 2 if use_bf16 else 4

    # Generation-aware VMEM budget (v5e/v6e: 128 MiB physical, v7x: 64 MiB).
    vmem_limit = min((_vmem_capacity_bytes() * 3) // 4, 100 << 20)
    budget = int(vmem_limit * 0.85)

    bm = block_m if block_m is not None else _pick_bm(B)
    bc = block_c if block_c is not None else _pick_bc(C, bm, D, n_out, wn_itemsize, budget)
    if block_m is None and block_c is None:
        while bm > 8 and _estimate_vmem(bm, bc, D, n_out, wn_itemsize) > budget:
            bm = max(8, ((bm // 2) // 8) * 8)

    # Grid: class tiles OUTER ("parallel"), batch tiles INNER ("arbitrary", carries the
    # hoisted w_norm scratch). W block index depends only on the outer axis -> each W
    # tile is fetched from HBM exactly once.
    grid = (pl.cdiv(C, bc), pl.cdiv(B, bm))

    # NOTE: partial boundary tiles read padded data; _normalize_rows on those rows may
    # produce junk lanes, but they are discarded on store (no cross-tile reductions).
    x_spec = pl.BlockSpec((bm, D), lambda j, i: (i, 0))
    w_spec = pl.BlockSpec((bc, D), lambda j, i: (j, 0))
    out_spec = pl.BlockSpec((bm, bc), lambda j, i: (i, j))
    scratch = [pltpu.VMEM((bc, D), jnp.bfloat16 if use_bf16 else jnp.float32)]
    cparams = pltpu.CompilerParams(
        dimension_semantics=("parallel", "arbitrary"),
        vmem_limit_bytes=int(vmem_limit))
    cost = pl.CostEstimate(
        flops=2 * B * C * D + 4 * (B * D + C * D),
        transcendentals=B + C,
        bytes_accessed=4 * (B * D + C * D + B) + n_out * 4 * B * C)

    if label is None:
        kernel = functools.partial(_cosine_kernel, use_bf16=use_bf16)
        return pl.pallas_call(
            kernel,
            out_shape=jax.ShapeDtypeStruct((B, C), jnp.float32),
            grid_spec=pltpu.PrefetchScalarGridSpec(
                num_scalar_prefetch=0,
                grid=grid,
                in_specs=[x_spec, w_spec],
                out_specs=out_spec,
                scratch_shapes=scratch),
            compiler_params=cparams,
            cost_estimate=cost,
        )(x, weight)

    lbl = label.reshape(B, 1).astype(jnp.int32)
    lbl_spec = pl.BlockSpec((bm, 1), lambda j, i: (i, 0))
    kernel = functools.partial(_margin_kernel, s=float(s), m=float(m),
                               block_c=bc, use_bf16=use_bf16)
    cosine, loss = pl.pallas_call(
        kernel,
        out_shape=(
            jax.ShapeDtypeStruct((B, C), jnp.float32),
            jax.ShapeDtypeStruct((B, C), jnp.float32),
        ),
        grid_spec=pltpu.PrefetchScalarGridSpec(
            num_scalar_prefetch=0,
            grid=grid,
            in_specs=[x_spec, w_spec, lbl_spec],
            out_specs=[out_spec, out_spec],
            scratch_shapes=scratch),
        compiler_params=cparams,
        cost_estimate=cost,
    )(x, weight, lbl)
    return cosine, loss


if __name__ == "__main__":
    def ref_forward(x, w, label, s, m):
        xn = x / jnp.maximum(jnp.linalg.norm(x, axis=-1, keepdims=True), 1e-12)
        wn = w / jnp.maximum(jnp.linalg.norm(w, axis=-1, keepdims=True), 1e-12)
        cos = xn @ wn.T
        oh = jax.nn.one_hot(label, w.shape[0], dtype=jnp.float32)
        loss = s * (oh * (cos - m) + (1.0 - oh) * cos)
        return cos, loss

    s_val, m_val = 15.0, 0.4
    key = jax.random.PRNGKey(0)

    # --- Test 1: module-consistent small shapes (single-tile grid, f32 path) ---
    in_features, out_features, batch = 32, 16, 8
    kx, kw, kl, key = jax.random.split(key, 4)
    bound = math.sqrt(6.0 / (in_features + out_features))   # xavier_uniform_
    weight = jax.random.uniform(
        kw, (out_features, in_features), jnp.float32, -bound, bound)
    x = jax.random.normal(kx, (batch, in_features), jnp.float32)
    label = jax.random.randint(kl, (batch,), 0, out_features, jnp.int32)

    cosine, loss = add_margin_product(x, weight, label, s=s_val, m=m_val)
    cosine = jax.block_until_ready(cosine)
    loss = jax.block_until_ready(loss)
    cos_ref, loss_ref = ref_forward(x, weight, label, s_val, m_val)
    assert jnp.allclose(cosine, cos_ref, atol=1e-4), "cosine mismatch (test 1)"
    assert jnp.allclose(loss, loss_ref, atol=1e-3), "loss mismatch (test 1)"

    # label=None (inference) path: cosine-only kernel
    cos_only = jax.block_until_ready(add_margin_product(x, weight, s=s_val, m=m_val))
    assert jnp.allclose(cos_only, cos_ref, atol=1e-4), "cosine-only mismatch"

    # --- Test 2: multi-tile grid (class-outer iteration, W-hoist, label shift) ---
    B2, C2, D2 = 16, 384, 64
    kx2, kw2, kl2, key = jax.random.split(key, 4)
    w2 = jax.random.normal(kw2, (C2, D2), jnp.float32) * 0.05
    x2 = jax.random.normal(kx2, (B2, D2), jnp.float32)
    l2 = jax.random.randint(kl2, (B2,), 0, C2, jnp.int32)
    cos2, loss2 = add_margin_product(
        x2, w2, l2, s=s_val, m=m_val, block_m=8, block_c=128)
    cos2 = jax.block_until_ready(cos2)
    loss2 = jax.block_until_ready(loss2)
    cos2_ref, loss2_ref = ref_forward(x2, w2, l2, s_val, m_val)
    assert jnp.allclose(cos2, cos2_ref, atol=1e-4), "cosine mismatch (test 2)"
    assert jnp.allclose(loss2, loss2_ref, atol=1e-3), "loss mismatch (test 2)"

    # --- Test 3: bf16 MXU-operand path (f32 accumulation), looser tolerance ---
    cos3, loss3 = add_margin_product(
        x2, w2, l2, s=s_val, m=m_val, block_m=8, block_c=128, use_bf16=True)
    cos3 = jax.block_until_ready(cos3)
    loss3 = jax.block_until_ready(loss3)
    assert jnp.allclose(cos3, cos2_ref, atol=2e-2), "cosine mismatch (bf16 path)"
    assert jnp.allclose(loss3, loss2_ref, atol=3.5e-1), "loss mismatch (bf16 path)"

    print("KERNEL_OK")
</pallas_src>

<mosaic_0001>
module attributes {stable_mosaic.version = 11 : i64} {
  func.func @_margin_kernel(%arg0: i32, %arg1: i32, %arg2: memref<8x32xf32, #tpu.memory_space<vmem>>, %arg3: memref<16x32xf32, #tpu.memory_space<vmem>>, %arg4: memref<8x1xi32, #tpu.memory_space<vmem>>, %arg5: memref<8x16xf32, #tpu.memory_space<vmem>>, %arg6: memref<8x16xf32, #tpu.memory_space<vmem>>, %arg7: memref<16x32xf32, #tpu.memory_space<vmem>>) attributes {dimension_semantics = [#tpu.dimension_semantics<parallel>, #tpu.dimension_semantics<arbitrary>], iteration_bounds = array<i64: 1, 1>, scalar_prefetch = 0 : i64, scratch_operands = 1 : i64, tpu.core_type = #tpu.core_type<tc>, window_params = [{transform_indices = @transform_0, window_bounds = array<i64: 8, 32>}, {transform_indices = @transform_1, window_bounds = array<i64: 16, 32>}, {transform_indices = @transform_2, window_bounds = array<i64: 8, 1>}, {transform_indices = @transform_3, window_bounds = array<i64: 8, 16>}, {transform_indices = @transform_4, window_bounds = array<i64: 8, 16>}]} {
    %c0_i32 = arith.constant 0 : i32
    %0 = arith.cmpi eq, %arg1, %c0_i32 : i32
    %1 = arith.extui %0 : i1 to i32
    %c0_i32_0 = arith.constant 0 : i32
    %2 = arith.cmpi ne, %1, %c0_i32_0 : i32
    scf.if %2 {
      %c0_15 = arith.constant 0 : index
      %c0_16 = arith.constant 0 : index
      %29 = vector.load %arg3[%c0_15, %c0_16] : memref<16x32xf32, #tpu.memory_space<vmem>>, vector<16x32xf32>
      %30 = arith.mulf %29, %29 : vector<16x32xf32>
      %cst_17 = arith.constant dense<0.000000e+00> : vector<16xf32>
      %31 = vector.multi_reduction <add>, %30, %cst_17 [1] : vector<16x32xf32> to vector<16xf32>
      %32 = vector.shape_cast %31 : vector<16xf32> to vector<16x1xf32>
      %cst_18 = arith.constant 1.000000e-24 : f32
      %33 = vector.broadcast %cst_18 : f32 to vector<16x1xf32>
      %34 = arith.maximumf %32, %33 : vector<16x1xf32>
      %35 = math.rsqrt %34 : vector<16x1xf32>
      %36 = vector.broadcast %35 : vector<16x1xf32> to vector<16x32xf32>
      %37 = arith.mulf %29, %36 : vector<16x32xf32>
      %c0_19 = arith.constant 0 : index
      %c0_20 = arith.constant 0 : index
      %38 = vector.load %arg7[%c0_19, %c0_20] : memref<16x32xf32, #tpu.memory_space<vmem>>, vector<16x32xf32>
      tpu.vector_store %arg7[%c0_19, %c0_20], %37 {strides = array<i32>} : memref<16x32xf32, #tpu.memory_space<vmem>>, vector<16x32xf32>,
    } else {
    }
    %c0 = arith.constant 0 : index
    %c0_1 = arith.constant 0 : index
    %3 = vector.load %arg2[%c0, %c0_1] : memref<8x32xf32, #tpu.memory_space<vmem>>, vector<8x32xf32>
    %4 = arith.mulf %3, %3 : vector<8x32xf32>
    %cst = arith.constant dense<0.000000e+00> : vector<8xf32>
    %5 = vector.multi_reduction <add>, %4, %cst [1] : vector<8x32xf32> to vector<8xf32>
    %6 = vector.shape_cast %5 : vector<8xf32> to vector<8x1xf32>
    %cst_2 = arith.constant 1.000000e-24 : f32
    %7 = vector.broadcast %cst_2 : f32 to vector<8x1xf32>
    %8 = arith.maximumf %6, %7 : vector<8x1xf32>
    %9 = math.rsqrt %8 : vector<8x1xf32>
    %10 = vector.broadcast %9 : vector<8x1xf32> to vector<8x32xf32>
    %11 = arith.mulf %3, %10 : vector<8x32xf32>
    %c0_3 = arith.constant 0 : index
    %c0_4 = arith.constant 0 : index
    %12 = vector.load %arg7[%c0_3, %c0_4] : memref<16x32xf32, #tpu.memory_space<vmem>>, vector<16x32xf32>
    %cst_5 = arith.constant dense<0.000000e+00> : vector<8x16xf32>
    %13 = tpu.matmul %11, %12, %cst_5 {dimension_numbers = #tpu.dot_dimension_numbers<[1], [1], [0], [0], [0, 0, 1, 0], [], []>} : vector<8x32xf32>, vector<16x32xf32>, vector<8x16xf32> -> vector<8x16xf32>
    %c0_6 = arith.constant 0 : index
    %c0_7 = arith.constant 0 : index
    %14 = vector.load %arg5[%c0_6, %c0_7] : memref<8x16xf32, #tpu.memory_space<vmem>>, vector<8x16xf32>
    tpu.vector_store %arg5[%c0_6, %c0_7], %13 {strides = array<i32>} : memref<8x16xf32, #tpu.memory_space<vmem>>, vector<8x16xf32>,
    %c0_8 = arith.constant 0 : index
    %c0_9 = arith.constant 0 : index
    %15 = vector.load %arg4[%c0_8, %c0_9] : memref<8x1xi32, #tpu.memory_space<vmem>>, vector<8x1xi32>
    %c16_i32 = arith.constant 16 : i32
    %16 = arith.muli %arg0, %c16_i32 : i32
    %17 = vector.broadcast %16 : i32 to vector<8x1xi32>
    %18 = arith.subi %15, %17 : vector<8x1xi32>
    %19 = tpu.iota {dimensions = array<i32: 1>} : vector<8x16xi32>
    %cst_10 = arith.constant 1.500000e+01 : f32
    %20 = vector.broadcast %cst_10 : f32 to vector<8x16xf32>
    %21 = arith.mulf %20, %13 : vector<8x16xf32>
    %22 = vector.broadcast %18 : vector<8x1xi32> to vector<8x16xi32>
    %23 = arith.cmpi eq, %19, %22 : vector<8x16xi32>
    %cst_11 = arith.constant 6.000000e+00 : f32
    %cst_12 = arith.constant 0.000000e+00 : f32
    %24 = vector.broadcast %cst_11 : f32 to vector<8x16xf32>
    %25 = vector.broadcast %cst_12 : f32 to vector<8x16xf32>
    %26 = arith.select %23, %24, %25 : vector<8x16xi1>, vector<8x16xf32>
    %27 = arith.subf %21, %26 : vector<8x16xf32>
    %c0_13 = arith.constant 0 : index
    %c0_14 = arith.constant 0 : index
    %28 = vector.load %arg6[%c0_13, %c0_14] : memref<8x16xf32, #tpu.memory_space<vmem>>, vector<8x16xf32>
    tpu.vector_store %arg6[%c0_13, %c0_14], %27 {strides = array<i32>} : memref<8x16xf32, #tpu.memory_space<vmem>>, vector<8x16xf32>,
    return
  }
  func.func @transform_0(%arg0: i32, %arg1: i32) -> (i32, i32) {
    %c0_i32 = arith.constant 0 : i32
    %c0_i32_0 = arith.constant 0 : i32
    return %arg1, %c0_i32 : i32, i32
  }
  func.func @transform_1(%arg0: i32, %arg1: i32) -> (i32, i32) {
    %c0_i32 = arith.constant 0 : i32
    %c0_i32_0 = arith.constant 0 : i32
    return %arg0, %c0_i32 : i32, i32
  }
  func.func @transform_2(%arg0: i32, %arg1: i32) -> (i32, i32) {
    %c0_i32 = arith.constant 0 : i32
    %c0_i32_0 = arith.constant 0 : i32
    return %arg1, %c0_i32 : i32, i32
  }
  func.func @transform_3(%arg0: i32, %arg1: i32) -> (i32, i32) {
    %c0_i32 = arith.constant 0 : i32
    return %arg1, %arg0 : i32, i32
  }
  func.func @transform_4(%arg0: i32, %arg1: i32) -> (i32, i32) {
    %c0_i32 = arith.constant 0 : i32
    return %arg1, %arg0 : i32, i32
  }
}

</mosaic_0001>

<llo_original>
// kernel: tpu_custom_call.1
$region0: #{tpu_custom_call.1}
  #allocation0 [shape = 'u32[]', space=smem, size = 0x4, offset = 0x4, fixed_abs, tag = 'smem constant byte address 0x4 - core index']
  #allocation1 [shape = 'u32[144,128]{1,0:T(1,128)}', space=vmem, size = 0x12000, scoped, tag = 'internal scratch']
  #allocation2 [shape = 'f32[16,32]{1,0:T(8,128)}', space=vmem, size = 0x2000, scoped, tag = 'scratch operand']
  %s0 = inlined_call_operand.vmem [shape: f32[8,32], index: 0, kind: input, shape index: {}]
  %s1 = inlined_call_operand.hbm [shape: f32[16,32], index: 1, kind: input, shape index: {}]
  %s2 = inlined_call_operand.vmem [shape: s32[8,1], index: 2, kind: input, shape index: {}]
  %s3 = inlined_call_operand.hbm [shape: f32[8,16], index: 3, kind: output, shape index: {0}]
  %s4 = inlined_call_operand.hbm [shape: f32[8,16], index: 4, kind: output, shape index: {1}]
  %5 = xla_tuple %s3, %s4
  %s6 = sld [smem:[#allocation0]]
  $region38: #{tpu_custom_call.1} parent=0
    _
  %s8 = ssub.s32 1, %s6
  %s9 = scalar_select 0, %s8, %s6
  $region1: #{tpu_custom_call.1} parent=0
    #allocation3 [shape = 'u8[8192]{0}', space=vmem, size = 0x2000, scoped, tag = 'input window, operand 1, single buffered']
    #allocation4 [shape = 's32[1]{0}', space=sflag, size = 0x4, scoped, tag = 'scoped memory for tpu_custom_call.1']
    #allocation5 [shape = 's32[1]{0}', space=sflag, size = 0x4, scoped, tag = 'scoped memory for tpu_custom_call.1']
    #allocation6 [shape = 'u8[4096]{0}', space=vmem, size = 0x1000, scoped, tag = 'output window, operand 0, single buffered']
    #allocation7 [shape = 'u8[4096]{0}', space=vmem, size = 0x1000, scoped, tag = 'output window, operand 1, single buffered']
    #allocation8 [shape = 's32[1]{0}', space=sflag, size = 0x4, scoped, tag = 'scoped memory for tpu_custom_call.1']
    %10 = vsyncpa [#allocation4], 0
    %11 = vsyncpa [#allocation5], 0
    %12 = vsyncpa [#allocation8], 0
    // Predicated region
    $region2: #{tpu_custom_call.1} parent=1 // pred_check
      _
    $region3: #{tpu_custom_call.1} parent=1 // pred_check_branch
      %14 = sbr.rel (0) target = $region5
    $region4: #{tpu_custom_call.1} parent=1 // pred_region
      _
    $region5: #{tpu_custom_call.1} parent=1 // pred_fallthru
      _
    // Predicated region
    $region6: #{tpu_custom_call.1} parent=1 // pred_check
      _
    $region7: #{tpu_custom_call.1} parent=1 // pred_check_branch
      %16 = sbr.rel (0) target = $region9
    $region8: #{tpu_custom_call.1} parent=1 // pred_region
      %s18 = ssub.s32 256, 256
      %19 = vsyncadd [#allocation4], %s18
      %s20 = sshll.u32 [#allocation3], 4
      %s21 = int_to_ptr.vmem [resolvable:$true] %s20
      %26 = dma.hbm_to_vmem [thread:$0]  %s1, 256, %s21, [#allocation4], 128, 128, 8
    $region9: #{tpu_custom_call.1} parent=1 // pred_fallthru
      _
    // Predicated region
    $region10: #{tpu_custom_call.1} parent=1 // pred_check
      _
    $region11: #{tpu_custom_call.1} parent=1 // pred_check_branch
      %28 = sbr.rel (0) target = $region13
    $region12: #{tpu_custom_call.1} parent=1 // pred_region
      _
    $region13: #{tpu_custom_call.1} parent=1 // pred_fallthru
      _
    // Predicated region
    $region14: #{tpu_custom_call.1} parent=1 // pred_check
      _
    $region15: #{tpu_custom_call.1} parent=1 // pred_check_branch
      %30 = sbr.rel (0) target = $region17
    $region16: #{tpu_custom_call.1} parent=1 // pred_region
      %31 = dma.done [#allocation4], 256
    $region17: #{tpu_custom_call.1} parent=1 // pred_fallthru
      _
    %p32 = scmp.eq.s32.totalorder 0, 0
    // Predicated region
    $region18: #{tpu_custom_call.1} parent=1 // pred_check
      %p33 = pneg %p32
    $region19: #{tpu_custom_call.1} parent=1 // pred_check_branch
      %35 = sbr.rel (%p33) target = $region21
    $region20: #{tpu_custom_call.1} parent=1 // pred_region
      %v36 = vld [vmem:[#allocation3] sm:$0xff]
      %v37 = vld [vmem:[#allocation3 + $0x8] sm:$0xff]
      %v38 = vmul.f32 %v36, %v36
      %v39 = vmul.f32 %v37, %v37
      %vm40 = vcmask 261120
      %v41 = vsel %vm40, %v38, 0.0
      %42 = vadd.xlane.f32.xlu0 %v41
      %v43 = vpop.xlane.xlu0 %42
      %v44 = vsel %vm40, %v39, 0.0
      %45 = vadd.xlane.f32.xlu0 %v44
      %v46 = vpop.xlane.xlu0 %45
      %v47 = vmax.f32 %v43, 1e-24
      %v48 = vmax.f32 %v46, 1e-24
      %v49 = vrsqrt.pop %v47
      %v50 = vrsqrt.pop %v48
      %v51 = vmul.f32 %v36, %v49
      %v52 = vmul.f32 %v37, %v50
      %53 = vst.msk [vmem:[#allocation2] sm:$0xff] %vm40, %v51
      %54 = vst.msk [vmem:[#allocation2 + $0x8] sm:$0xff] %vm40, %v52
    $region21: #{tpu_custom_call.1} parent=1 // pred_fallthru
      _
    %v55 = vld [vmem:[%s0] sm:$0xff]
    %v56 = vmul.f32 %v55, %v55
    %vm57 = vcmask 261120
    %v58 = vsel %vm57, %v56, 0.0
    %59 = vadd.xlane.f32.xlu0 %v58
    %v60 = vpop.xlane.xlu0 %59
    %v61 = vmax.f32 %v60, 1e-24
    %v62 = vrsqrt.pop %v61
    %v63 = vmul.f32 %v55, %v62
    %v64 = vld [vmem:[#allocation2] sm:$0xff]
    %v65 = vld [vmem:[#allocation2 + $0x8] sm:$0xff]
    %v67 = vsel %vm57, %v63, 0
    %v70 = vsel %vm57, %v64, 0
    %v73 = vsel %vm57, %v65, 0
    %75 = vmatprep.subr.mxu0 0.0
    %76 = vmatpush1.xpose.msra.mxu0 0.0
    %77 = vmatprep.subr.mxu0 0.0
    %78 = vmatpush1.xpose.msra.mxu0 0.0
    %79 = vmatprep.subr.mxu0 0.0
    %80 = vmatpush1.xpose.msra.mxu0 0.0
    %81 = vmatprep.subr.mxu0 0.0
    %82 = vmatpush1.xpose.msra.mxu0 0.0
    %83 = vmatprep.subr.mxu0 0.0
    %84 = vmatpush1.xpose.msra.mxu0 0.0
    %85 = vmatprep.subr.mxu0 0.0
    %86 = vmatpush1.xpose.msra.mxu0 0.0
    %87 = vmatprep.subr.mxu0 0.0
    %88 = vmatpush1.xpose.msra.mxu0 0.0
    %89 = vmatprep.subr.mxu0 0.0
    %90 = vmatpush1.xpose.msra.mxu0 0.0
    %91 = vmatprep.subr.mxu0 0.0
    %92 = vmatpush1.xpose.msra.mxu0 0.0
    %93 = vmatprep.subr.mxu0 0.0
    %94 = vmatpush1.xpose.msra.mxu0 0.0
    %95 = vmatprep.subr.mxu0 0.0
    %96 = vmatpush1.xpose.msra.mxu0 0.0
    %97 = vmatprep.subr.mxu0 0.0
    %98 = vmatpush1.xpose.msra.mxu0 0.0
    %99 = vmatprep.subr.mxu0 0.0
    %100 = vmatpush1.xpose.msra.mxu0 0.0
    %101 = vmatprep.subr.mxu0 0.0
    %102 = vmatpush1.xpose.msra.mxu0 0.0
    %103 = vmatprep.subr.mxu0 0.0
    %104 = vmatpush1.xpose.msra.mxu0 %v73
    %105 = vmatprep.subr.mxu0 0.0
    %106 = vmatpush1.xpose.msra.mxu0 %v70
    %107 = vmatprep.subr.mxu0 0.0
    %108 = vmatpush2.xpose.msra.mxu0 0.0
    %109 = vmatprep.subr.mxu0 0.0
    %110 = vmatpush2.xpose.msra.mxu0 0.0
    %111 = vmatprep.subr.mxu0 0.0
    %112 = vmatpush2.xpose.msra.mxu0 0.0
    %113 = vmatprep.subr.mxu0 0.0
    %114 = vmatpush2.xpose.msra.mxu0 0.0
    %115 = vmatprep.subr.mxu0 0.0
    %116 = vmatpush2.xpose.msra.mxu0 0.0
    %117 = vmatprep.subr.mxu0 0.0
    %118 = vmatpush2.xpose.msra.mxu0 0.0
    %119 = vmatprep.subr.mxu0 0.0
    %120 = vmatpush2.xpose.msra.mxu0 0.0
    %121 = vmatprep.subr.mxu0 0.0
    %122 = vmatpush2.xpose.msra.mxu0 0.0
    %123 = vmatprep.subr.mxu0 0.0
    %124 = vmatpush2.xpose.msra.mxu0 0.0
    %125 = vmatprep.subr.mxu0 0.0
    %126 = vmatpush2.xpose.msra.mxu0 0.0
    %127 = vmatprep.subr.mxu0 0.0
    %128 = vmatpush2.xpose.msra.mxu0 0.0
    %129 = vmatprep.subr.mxu0 0.0
    %130 = vmatpush2.xpose.msra.mxu0 0.0
    %131 = vmatprep.subr.mxu0 0.0
    %132 = vmatpush2.xpose.msra.mxu0 0.0
    %133 = vmatprep.subr.mxu0 0.0
    %134 = vmatpush2.xpose.msra.mxu0 0.0
    %135 = vmatprep.subr.mxu0 0.0
    %136 = vmatpush2.xpose.msra.mxu0 0.0
    %137 = vmatprep.subr.mxu0 0.0
    %138 = vmatpush2.xpose.msra.mxu0 0.0
    %139 = vmatprep.mubr.f32.mxu0 0.0
    %140 = vmatmul.mubr.f32.gmra.mxu0 %v67
    %v141 = vpop.f32.mrf.mxu0
    %v142 = vadd.f32 0.0, %v141
    %v143 = vpop.f32.mrf.mxu0
    %144 = vdwg.mxu0
    %vm145 = vcmask 130048
    %146 = vst.msk [vmem:[#allocation6] sm:$0xff] %vm145, %v142
    %v147 = vld [vmem:[%s2] sm:$0xff]
    %s148 = smul.u32 0, 16
    %v149 = vstv %s148
    %v150 = vsub.s32 %v147, %v149
    %v151 = vlaneseq
    %v152 = vand.u32 %v151, 127
    %v153 = vmul.f32 %v142, 15.0
    %154 = vset.pattern.permute.xlu0 0
    %155 = vperm.xlu0 %154, %v150
    %v156 = vpop.permute.xlu0 %155
    %vm157 = vcmp.eq.s32.totalorder %v152, %v156
    %v158 = vsel %vm157, 6.0, 0.0
    %v159 = vsub.f32 %v153, %v158
    %160 = vst.msk [vmem:[#allocation7] sm:$0xff] %vm145, %v159
    // Predicated region
    $region22: #{tpu_custom_call.1} parent=1 // pred_check
      _
    $region23: #{tpu_custom_call.1} parent=1 // pred_check_branch
      %162 = sbr.rel (0) target = $region25
    $region24: #{tpu_custom_call.1} parent=1 // pred_region
      %s164 = ssub.s32 128, 128
      %165 = vsyncadd [#allocation5], %s164
      %s167 = sshll.u32 [#allocation6], 4
      %s168 = int_to_ptr.vmem [resolvable:$true] %s167
      %170 = dma.vmem_to_hbm [thread:$0]  %s168, 128, %s3, [#allocation5]
    $region25: #{tpu_custom_call.1} parent=1 // pred_fallthru
      _
    // Predicated region
    $region26: #{tpu_custom_call.1} parent=1 // pred_check
      _
    $region27: #{tpu_custom_call.1} parent=1 // pred_check_branch
      %172 = sbr.rel (0) target = $region29
    $region28: #{tpu_custom_call.1} parent=1 // pred_region
      %s174 = ssub.s32 128, 128
      %175 = vsyncadd [#allocation8], %s174
      %s177 = sshll.u32 [#allocation7], 4
      %s178 = int_to_ptr.vmem [resolvable:$true] %s177
      %180 = dma.vmem_to_hbm [thread:$0]  %s178, 128, %s4, [#allocation8]
    $region29: #{tpu_custom_call.1} parent=1 // pred_fallthru
      _
    // Predicated region
    $region30: #{tpu_custom_call.1} parent=1 // pred_check
      _
    $region31: #{tpu_custom_call.1} parent=1 // pred_check_branch
      %182 = sbr.rel (0) target = $region33
    $region32: #{tpu_custom_call.1} parent=1 // pred_region
      %183 = dma.done [#allocation5], 128
    $region33: #{tpu_custom_call.1} parent=1 // pred_fallthru
      _
    // Predicated region
    $region34: #{tpu_custom_call.1} parent=1 // pred_check
      _
    $region35: #{tpu_custom_call.1} parent=1 // pred_check_branch
      %185 = sbr.rel (0) target = $region37
    $region36: #{tpu_custom_call.1} parent=1 // pred_region
      %186 = dma.done [#allocation8], 128
    $region37: #{tpu_custom_call.1} parent=1 // pred_fallthru
      _
    %187 = vsyncpa [#allocation4], 1
    %188 = vsyncpa [#allocation5], 1
    %189 = vsyncpa [#allocation8], 1

</llo_original>
